<compile_context>
chip_gen: v5e
topology: v5e:2x2
jax: 0.10.0
libtpu: 0.0.40
codegen_flags: <defaults>
</compile_context>

<pallas_src>
import functools

import jax
import jax.numpy as jnp
from jax.experimental import pallas as pl
from jax.experimental.pallas import tpu as pltpu


def _bigram_kernel(*refs, compute_loss):
    if compute_loss:
        idx_ref, tgt_ref, table_ref, logits_ref, loss_ref = refs
    else:
        idx_ref, table_ref, logits_ref = refs
        tgt_ref = loss_ref = None

    tm, v_pad = logits_ref.shape

    idx_tile = idx_ref[...]                                         # (tm, 1) int32
    col = jax.lax.broadcasted_iota(jnp.int32, (tm, v_pad), 1)       # lane index

    # Vectorized one-hot: (tm, v_pad) in one compare+select, no per-row loop.
    onehot = (col == idx_tile).astype(jnp.float32)

    # Embedding gather on the MXU: onehot(idx) @ table.
    logits = jnp.dot(onehot, table_ref[...], preferred_element_type=jnp.float32)
    logits_ref[...] = logits

    if compute_loss:
        tgt_tile = tgt_ref[...]                                     # (tm, 1) int32
        # Numerically stable log-sum-exp along the lane (vocab) axis.
        m = jnp.max(logits, axis=-1, keepdims=True)
        lse = jnp.log(jnp.sum(jnp.exp(logits - m), axis=-1, keepdims=True)) + m
        # Target logit pick: compare + select + lane reduce (no second one-hot matmul).
        tgt_logit = jnp.sum(jnp.where(col == tgt_tile, logits, 0.0),
                            axis=-1, keepdims=True)
        # Per-token NLL; mean reduction happens in the wrapper (no resident accumulator).
        loss_ref[...] = lse - tgt_logit


def _round_up(x, m):
    return ((x + m - 1) // m) * m


def bigram_forward(idx, table, targets=None, *, tm_max=512):
    """Forward pass of BigramLanguageModel.

    Returns (logits, loss):
      - targets is None : logits has shape (B, T, V), loss is None
      - targets given   : logits has shape (B*T, V),  loss is mean cross-entropy (scalar)
    """
    B, T = idx.shape
    V = table.shape[0]
    N = B * T

    # Token tile: large (amortize ~0.35us/step grid overhead), multiple of 8 sublanes,
    # but never bigger than the (padded) problem.
    tm = min(int(tm_max), _round_up(N, 8))
    tm = _round_up(tm, 8)
    n_pad = _round_up(N, tm)
    num_tiles = n_pad // tm

    # Vocab padded to the 128-lane width; padded columns get -1e30 so exp() underflows to 0.
    v_pad = _round_up(V, 128)
    table_f32 = table.astype(jnp.float32)
    if v_pad != V:
        table_f32 = jnp.pad(table_f32, ((0, v_pad - V), (0, v_pad - V)),
                            constant_values=-1e30)

    idx_flat = jnp.pad(idx.reshape(N).astype(jnp.int32), (0, n_pad - N))
    idx_2d = idx_flat.reshape(n_pad, 1)

    compute_loss = targets is not None
    kernel = functools.partial(_bigram_kernel, compute_loss=compute_loss)

    in_specs = [pl.BlockSpec((tm, 1), lambda i: (i, 0))]
    inputs = [idx_2d]
    if compute_loss:
        tgt_flat = jnp.pad(targets.reshape(N).astype(jnp.int32), (0, n_pad - N))
        in_specs.append(pl.BlockSpec((tm, 1), lambda i: (i, 0)))
        inputs.append(tgt_flat.reshape(n_pad, 1))
    # Full table resident in VMEM every step (constant block index -> fetched once).
    in_specs.append(pl.BlockSpec((v_pad, v_pad), lambda i: (0, 0)))
    inputs.append(table_f32)

    out_shape = [jax.ShapeDtypeStruct((n_pad, v_pad), jnp.float32)]
    out_specs = [pl.BlockSpec((tm, v_pad), lambda i: (i, 0))]
    if compute_loss:
        out_shape.append(jax.ShapeDtypeStruct((n_pad, 1), jnp.float32))
        out_specs.append(pl.BlockSpec((tm, 1), lambda i: (i, 0)))

    outs = pl.pallas_call(
        kernel,
        out_shape=tuple(out_shape),
        grid_spec=pltpu.PrefetchScalarGridSpec(
            num_scalar_prefetch=0,
            grid=(num_tiles,),
            in_specs=in_specs,
            out_specs=tuple(out_specs),
        ),
        compiler_params=pltpu.CompilerParams(
            # No cross-iteration state -> grid axis is parallel (megacore on v7x).
            dimension_semantics=("parallel",),
            vmem_limit_bytes=64 * 1024 * 1024,
        ),
    )(*inputs)

    if compute_loss:
        logits_pad, nll_pad = outs
    else:
        (logits_pad,) = outs

    logits = logits_pad[:N, :V]
    if not compute_loss:
        return logits.reshape(B, T, V), None
    loss = jnp.mean(nll_pad[:N, 0])
    return logits, loss


def _reference_forward(idx, table, targets=None):
    logits = table[idx]  # (B, T, V)
    if targets is None:
        return logits, None
    B, T, V = logits.shape
    lf = logits.reshape(B * T, V)
    tf = targets.reshape(B * T)
    lse = jax.scipy.special.logsumexp(lf, axis=-1)
    tgt_logit = jnp.take_along_axis(lf, tf[:, None], axis=-1)[:, 0]
    return lf, jnp.mean(lse - tgt_logit)


if __name__ == "__main__":
    key = jax.random.PRNGKey(0)

    # ---- Case 1: lane-aligned vocab (no padding path) ----
    vocab_size = 128
    B, T = 2, 8
    k_table, k_idx, k_tgt, key = jax.random.split(key, 4)
    table = jax.random.normal(k_table, (vocab_size, vocab_size), dtype=jnp.float32)
    idx = jax.random.randint(k_idx, (B, T), 0, vocab_size, dtype=jnp.int32)
    targets = jax.random.randint(k_tgt, (B, T), 0, vocab_size, dtype=jnp.int32)

    logits, loss = bigram_forward(idx, table, targets)
    logits = jax.block_until_ready(logits)
    loss = jax.block_until_ready(loss)

    logits_nt, loss_nt = bigram_forward(idx, table, None)
    logits_nt = jax.block_until_ready(logits_nt)

    ref_logits, ref_loss = _reference_forward(idx, table, targets)
    ref_logits_nt, _ = _reference_forward(idx, table, None)
    assert logits.shape == (B * T, vocab_size)
    assert logits_nt.shape == (B, T, vocab_size)
    assert loss_nt is None
    assert jnp.allclose(logits, ref_logits, atol=1e-5, rtol=1e-5)
    assert jnp.allclose(logits_nt, ref_logits_nt, atol=1e-5, rtol=1e-5)
    assert jnp.allclose(loss, ref_loss, atol=1e-4, rtol=1e-4)

    # ---- Case 2: odd vocab (65) + odd N (15) exercising the padding path ----
    vocab_size2 = 65
    B2, T2 = 3, 5
    k_table2, k_idx2, k_tgt2, key = jax.random.split(key, 4)
    table2 = jax.random.normal(k_table2, (vocab_size2, vocab_size2), dtype=jnp.float32)
    idx2 = jax.random.randint(k_idx2, (B2, T2), 0, vocab_size2, dtype=jnp.int32)
    targets2 = jax.random.randint(k_tgt2, (B2, T2), 0, vocab_size2, dtype=jnp.int32)

    logits2, loss2 = bigram_forward(idx2, table2, targets2)
    logits2 = jax.block_until_ready(logits2)
    loss2 = jax.block_until_ready(loss2)

    ref_logits2, ref_loss2 = _reference_forward(idx2, table2, targets2)
    assert logits2.shape == (B2 * T2, vocab_size2)
    assert jnp.allclose(logits2, ref_logits2, atol=1e-5, rtol=1e-5)
    assert jnp.allclose(loss2, ref_loss2, atol=1e-4, rtol=1e-4)

    print("KERNEL_OK")
</pallas_src>

<mosaic_0001>
module attributes {stable_mosaic.version = 11 : i64} {
  func.func @_bigram_kernel(%arg0: i32, %arg1: memref<16x1xi32, #tpu.memory_space<vmem>>, %arg2: memref<16x1xi32, #tpu.memory_space<vmem>>, %arg3: memref<128x128xf32, #tpu.memory_space<vmem>>, %arg4: memref<16x128xf32, #tpu.memory_space<vmem>>, %arg5: memref<16x1xf32, #tpu.memory_space<vmem>>) attributes {dimension_semantics = [#tpu.dimension_semantics<parallel>], iteration_bounds = array<i64: 1>, scalar_prefetch = 0 : i64, scratch_operands = 0 : i64, tpu.core_type = #tpu.core_type<tc>, window_params = [{transform_indices = @transform_0, window_bounds = array<i64: 16, 1>}, {transform_indices = @transform_1, window_bounds = array<i64: 16, 1>}, {pipeline_mode = #tpu.pipeline_mode<synchronous>, transform_indices = @transform_2, window_bounds = array<i64: 128, 128>}, {transform_indices = @transform_3, window_bounds = array<i64: 16, 128>}, {transform_indices = @transform_4, window_bounds = array<i64: 16, 1>}]} {
    %c0 = arith.constant 0 : index
    %c0_0 = arith.constant 0 : index
    %0 = vector.load %arg1[%c0, %c0_0] : memref<16x1xi32, #tpu.memory_space<vmem>>, vector<16x1xi32>
    %1 = tpu.iota {dimensions = array<i32: 1>} : vector<16x128xi32>
    %2 = vector.broadcast %0 : vector<16x1xi32> to vector<16x128xi32>
    %3 = arith.cmpi eq, %1, %2 : vector<16x128xi32>
    %4 = arith.extui %3 : vector<16x128xi1> to vector<16x128xi32>
    %5 = arith.sitofp %4 : vector<16x128xi32> to vector<16x128xf32>
    %c0_1 = arith.constant 0 : index
    %c0_2 = arith.constant 0 : index
    %6 = vector.load %arg3[%c0_1, %c0_2] : memref<128x128xf32, #tpu.memory_space<vmem>>, vector<128x128xf32>
    %cst = arith.constant dense<0.000000e+00> : vector<16x128xf32>
    %7 = tpu.matmul %5, %6, %cst {dimension_numbers = #tpu.dot_dimension_numbers<[1], [0], [0], [1], [0, 0, 1, 1], [], []>} : vector<16x128xf32>, vector<128x128xf32>, vector<16x128xf32> -> vector<16x128xf32>
    %c0_3 = arith.constant 0 : index
    %c0_4 = arith.constant 0 : index
    %8 = vector.load %arg4[%c0_3, %c0_4] : memref<16x128xf32, #tpu.memory_space<vmem>>, vector<16x128xf32>
    tpu.vector_store %arg4[%c0_3, %c0_4], %7 {strides = array<i32>} : memref<16x128xf32, #tpu.memory_space<vmem>>, vector<16x128xf32>,
    %c0_5 = arith.constant 0 : index
    %c0_6 = arith.constant 0 : index
    %9 = vector.load %arg2[%c0_5, %c0_6] : memref<16x1xi32, #tpu.memory_space<vmem>>, vector<16x1xi32>
    %cst_7 = arith.constant dense<0xFF800000> : vector<16xf32>
    %10 = vector.multi_reduction <maximumf>, %7, %cst_7 [1] : vector<16x128xf32> to vector<16xf32>
    %11 = vector.shape_cast %10 : vector<16xf32> to vector<16x1xf32>
    %12 = vector.broadcast %11 : vector<16x1xf32> to vector<16x128xf32>
    %13 = arith.subf %7, %12 : vector<16x128xf32>
    %14 = math.exp %13 : vector<16x128xf32>
    %cst_8 = arith.constant dense<0.000000e+00> : vector<16xf32>
    %15 = vector.multi_reduction <add>, %14, %cst_8 [1] : vector<16x128xf32> to vector<16xf32>
    %16 = vector.shape_cast %15 : vector<16xf32> to vector<16x1xf32>
    %17 = math.log %16 : vector<16x1xf32>
    %18 = arith.addf %17, %11 : vector<16x1xf32>
    %19 = vector.broadcast %9 : vector<16x1xi32> to vector<16x128xi32>
    %20 = arith.cmpi eq, %1, %19 : vector<16x128xi32>
    %cst_9 = arith.constant 0.000000e+00 : f32
    %21 = vector.broadcast %cst_9 : f32 to vector<16x128xf32>
    %22 = arith.select %20, %7, %21 : vector<16x128xi1>, vector<16x128xf32>
    %cst_10 = arith.constant dense<0.000000e+00> : vector<16xf32>
    %23 = vector.multi_reduction <add>, %22, %cst_10 [1] : vector<16x128xf32> to vector<16xf32>
    %24 = vector.shape_cast %23 : vector<16xf32> to vector<16x1xf32>
    %25 = arith.subf %18, %24 : vector<16x1xf32>
    %c0_11 = arith.constant 0 : index
    %c0_12 = arith.constant 0 : index
    %26 = vector.load %arg5[%c0_11, %c0_12] : memref<16x1xf32, #tpu.memory_space<vmem>>, vector<16x1xf32>
    tpu.vector_store %arg5[%c0_11, %c0_12], %25 {strides = array<i32>} : memref<16x1xf32, #tpu.memory_space<vmem>>, vector<16x1xf32>,
    return
  }
  func.func @transform_0(%arg0: i32) -> (i32, i32) {
    %c0_i32 = arith.constant 0 : i32
    %c0_i32_0 = arith.constant 0 : i32
    return %arg0, %c0_i32 : i32, i32
  }
  func.func @transform_1(%arg0: i32) -> (i32, i32) {
    %c0_i32 = arith.constant 0 : i32
    %c0_i32_0 = arith.constant 0 : i32
    return %arg0, %c0_i32 : i32, i32
  }
  func.func @transform_2(%arg0: i32) -> (i32, i32) {
    %c0_i32 = arith.constant 0 : i32
    %c0_i32_0 = arith.constant 0 : i32
    %c0_i32_1 = arith.constant 0 : i32
    return %c0_i32, %c0_i32_0 : i32, i32
  }
  func.func @transform_3(%arg0: i32) -> (i32, i32) {
    %c0_i32 = arith.constant 0 : i32
    %c0_i32_0 = arith.constant 0 : i32
    return %arg0, %c0_i32 : i32, i32
  }
  func.func @transform_4(%arg0: i32) -> (i32, i32) {
    %c0_i32 = arith.constant 0 : i32
    %c0_i32_0 = arith.constant 0 : i32
    return %arg0, %c0_i32 : i32, i32
  }
}

</mosaic_0001>

<llo_original>
// kernel: tpu_custom_call.1
$region0: #{tpu_custom_call.1}
  #allocation0 [shape = 'u32[]', space=smem, size = 0x4, offset = 0x4, fixed_abs, tag = 'smem constant byte address 0x4 - core index']
  #allocation1 [shape = 'u32[72,128]{1,0:T(1,128)}', space=vmem, size = 0x9000, scoped, tag = 'internal scratch']
  %s0 = inlined_call_operand.vmem [shape: s32[16,1], index: 0, kind: input, shape index: {}]
  %s1 = inlined_call_operand.vmem [shape: s32[16,1], index: 1, kind: input, shape index: {}]
  %s2 = inlined_call_operand.hbm [shape: f32[128,128], index: 2, kind: input, shape index: {}]
  %s3 = inlined_call_operand.hbm [shape: f32[16,128], index: 3, kind: output, shape index: {0}]
  %s4 = inlined_call_operand.vmem [shape: f32[16,1], index: 4, kind: output, shape index: {1}]
  %5 = xla_tuple %s3, %s4
  %s6 = sld [smem:[#allocation0]]
  $region34: #{tpu_custom_call.1} parent=0
    _
  %s8 = ssub.s32 1, %s6
  %s9 = scalar_select 0, %s8, %s6
  $region1: #{tpu_custom_call.1} parent=0
    #allocation2 [shape = 'u8[65536]{0}', space=vmem, size = 0x10000, scoped, tag = 'input window, operand 2, single buffered']
    #allocation3 [shape = 's32[1]{0}', space=sflag, size = 0x4, scoped, tag = 'scoped memory for tpu_custom_call.1']
    #allocation4 [shape = 's32[1]{0}', space=sflag, size = 0x4, scoped, tag = 'scoped memory for tpu_custom_call.1']
    #allocation5 [shape = 'u8[8192]{0}', space=vmem, size = 0x2000, scoped, tag = 'output window, operand 0, single buffered']
    %10 = vsyncpa [#allocation3], 0
    %11 = vsyncpa [#allocation4], 0
    // Predicated region
    $region2: #{tpu_custom_call.1} parent=1 // pred_check
      _
    $region3: #{tpu_custom_call.1} parent=1 // pred_check_branch
      %13 = sbr.rel (0) target = $region5
    $region4: #{tpu_custom_call.1} parent=1 // pred_region
      _
    $region5: #{tpu_custom_call.1} parent=1 // pred_fallthru
      _
    // Predicated region
    $region6: #{tpu_custom_call.1} parent=1 // pred_check
      _
    $region7: #{tpu_custom_call.1} parent=1 // pred_check_branch
      %15 = sbr.rel (0) target = $region9
    $region8: #{tpu_custom_call.1} parent=1 // pred_region
      _
    $region9: #{tpu_custom_call.1} parent=1 // pred_fallthru
      _
    // Predicated region
    $region10: #{tpu_custom_call.1} parent=1 // pred_check
      _
    $region11: #{tpu_custom_call.1} parent=1 // pred_check_branch
      %17 = sbr.rel (0) target = $region13
    $region12: #{tpu_custom_call.1} parent=1 // pred_region
      %19 = vsyncadd [#allocation3], 0
      %s20 = sshll.u32 %s2, 4
      %s21 = int_to_ptr.hbm [resolvable:$true] %s20
      %s22 = sshll.u32 [#allocation2], 4
      %s23 = int_to_ptr.vmem [resolvable:$true] %s22
      %28 = dma.hbm_to_vmem [thread:$0]  %s21, 2048, %s23, [#allocation3], 128, 128, 8
    $region13: #{tpu_custom_call.1} parent=1 // pred_fallthru
      _
    // Predicated region
    $region14: #{tpu_custom_call.1} parent=1 // pred_check
      _
    $region15: #{tpu_custom_call.1} parent=1 // pred_check_branch
      %30 = sbr.rel (0) target = $region17
    $region16: #{tpu_custom_call.1} parent=1 // pred_region
      %32 = dma.done [#allocation3], 2048
    $region17: #{tpu_custom_call.1} parent=1 // pred_fallthru
      _
    %v33 = vld [vmem:[%s0] sm:$0xff]
    %v34 = vld [vmem:[%s0 + $0x8] sm:$0xff]
    %v35 = vlaneseq
    %v36 = vand.u32 %v35, 127
    %37 = vset.pattern.permute.xlu0 0
    %38 = vperm.xlu0 %37, %v33
    %v39 = vpop.permute.xlu0 %38
    %40 = vset.pattern.permute.xlu0 0
    %41 = vperm.xlu0 %40, %v34
    %v42 = vpop.permute.xlu0 %41
    %vm43 = vcmp.eq.s32.totalorder %v36, %v39
    %vm44 = vcmp.eq.s32.totalorder %v36, %v42
    %v45 = vsel %vm43, 1, 0
    %v46 = vsel %vm44, 1, 0
    %v47 = vcvt.s32.f32 %v45
    %v48 = vcvt.s32.f32 %v46
    %v49 = vld [vmem:[#allocation2] sm:$0xff]
    %v50 = vld [vmem:[#allocation2 + $0x8] sm:$0xff]
    %v51 = vld [vmem:[#allocation2 + $0x10] sm:$0xff]
    %v52 = vld [vmem:[#allocation2 + $0x18] sm:$0xff]
    %v53 = vld [vmem:[#allocation2 + $0x20] sm:$0xff]
    %v54 = vld [vmem:[#allocation2 + $0x28] sm:$0xff]
    %v55 = vld [vmem:[#allocation2 + $0x30] sm:$0xff]
    %v56 = vld [vmem:[#allocation2 + $0x38] sm:$0xff]
    %v57 = vld [vmem:[#allocation2 + $0x40] sm:$0xff]
    %v58 = vld [vmem:[#allocation2 + $0x48] sm:$0xff]
    %v59 = vld [vmem:[#allocation2 + $0x50] sm:$0xff]
    %v60 = vld [vmem:[#allocation2 + $0x58] sm:$0xff]
    %v61 = vld [vmem:[#allocation2 + $0x60] sm:$0xff]
    %v62 = vld [vmem:[#allocation2 + $0x68] sm:$0xff]
    %v63 = vld [vmem:[#allocation2 + $0x70] sm:$0xff]
    %v64 = vld [vmem:[#allocation2 + $0x78] sm:$0xff]
    %65 = vmatpush.msra.mxu0 %v64
    %66 = vmatpush.msra.mxu0 %v63
    %67 = vmatpush.msra.mxu0 %v62
    %68 = vmatpush.msra.mxu0 %v61
    %69 = vmatpush.msra.mxu0 %v60
    %70 = vmatpush.msra.mxu0 %v59
    %71 = vmatpush.msra.mxu0 %v58
    %72 = vmatpush.msra.mxu0 %v57
    %73 = vmatpush.msra.mxu0 %v56
    %74 = vmatpush.msra.mxu0 %v55
    %75 = vmatpush.msra.mxu0 %v54
    %76 = vmatpush.msra.mxu0 %v53
    %77 = vmatpush.msra.mxu0 %v52
    %78 = vmatpush.msra.mxu0 %v51
    %79 = vmatpush.msra.mxu0 %v50
    %80 = vmatpush.msra.mxu0 %v49
    %81 = vmatmul.f32.gmra.mxu0 %v47
    %v82 = vpop.f32.mrf.mxu0
    %v83 = vadd.f32 0.0, %v82
    %84 = vmatmul.f32.gmra.mxu0 %v48
    %v85 = vpop.f32.mrf.mxu0
    %v86 = vadd.f32 0.0, %v85
    %87 = vdwg.mxu0
    %88 = vst [vmem:[#allocation5] sm:$0xff] %v83
    %89 = vst [vmem:[#allocation5 + $0x8] sm:$0xff] %v86
    %v90 = vld [vmem:[%s1] sm:$0xff]
    %v91 = vld [vmem:[%s1 + $0x8] sm:$0xff]
    %92 = vmax.xlane.f32.xlu0 %v83
    %v93 = vpop.xlane.xlu0 %92
    %94 = vmax.xlane.f32.xlu0 %v86
    %v95 = vpop.xlane.xlu0 %94
    %v96 = vsub.f32 %v83, %v93
    %v97 = vsub.f32 %v86, %v95
    %v98 = vmul.f32 %v96, 1.442695
    %v99 = vpow.pop %v98
    %v100 = vmul.f32 %v97, 1.442695
    %v101 = vpow.pop %v100
    %102 = vadd.xlane.f32.xlu0 %v99
    %v103 = vpop.xlane.xlu0 %102
    %104 = vadd.xlane.f32.xlu0 %v101
    %v105 = vpop.xlane.xlu0 %104
    %v106 = vlog2.pop %v103
    %v107 = vmul.f32 %v106, 0.6931472
    %v108 = vlog2.pop %v105
    %v109 = vmul.f32 %v108, 0.6931472
    %v110 = vadd.f32 %v107, %v93
    %v111 = vadd.f32 %v109, %v95
    %112 = vset.pattern.permute.xlu0 0
    %113 = vperm.xlu0 %112, %v90
    %v114 = vpop.permute.xlu0 %113
    %115 = vset.pattern.permute.xlu0 0
    %116 = vperm.xlu0 %115, %v91
    %v117 = vpop.permute.xlu0 %116
    %vm118 = vcmp.eq.s32.totalorder %v36, %v114
    %vm119 = vcmp.eq.s32.totalorder %v36, %v117
    %v120 = vsel %vm118, %v83, 0.0
    %v121 = vsel %vm119, %v86, 0.0
    %122 = vadd.xlane.f32.xlu0 %v120
    %v123 = vpop.xlane.xlu0 %122
    %124 = vadd.xlane.f32.xlu0 %v121
    %v125 = vpop.xlane.xlu0 %124
    %v126 = vsub.f32 %v110, %v123
    %v127 = vsub.f32 %v111, %v125
    %vm128 = vcmask 7168
    %129 = vst.msk [vmem:[%s4] sm:$0xff] %vm128, %v126
    %130 = vst.msk [vmem:[%s4 + $0x8] sm:$0xff] %vm128, %v127
    // Predicated region
    $region18: #{tpu_custom_call.1} parent=1 // pred_check
      _
    $region19: #{tpu_custom_call.1} parent=1 // pred_check_branch
      %132 = sbr.rel (0) target = $region21
    $region20: #{tpu_custom_call.1} parent=1 // pred_region
      %134 = vsyncadd [#allocation4], 0
      %s135 = sshll.u32 [#allocation5], 4
      %s136 = int_to_ptr.vmem [resolvable:$true] %s135
      %s137 = sshll.u32 %s3, 4
      %s138 = int_to_ptr.hbm [resolvable:$true] %s137
      %143 = dma.vmem_to_hbm [thread:$0]  %s136, 256, %s138, [#allocation4], 128, 128, 8
    $region21: #{tpu_custom_call.1} parent=1 // pred_fallthru
      _
    // Predicated region
    $region22: #{tpu_custom_call.1} parent=1 // pred_check
      _
    $region23: #{tpu_custom_call.1} parent=1 // pred_check_branch
      %145 = sbr.rel (0) target = $region25
    $region24: #{tpu_custom_call.1} parent=1 // pred_region
      _
    $region25: #{tpu_custom_call.1} parent=1 // pred_fallthru
      _
    // Predicated region
    $region26: #{tpu_custom_call.1} parent=1 // pred_check
      _
    $region27: #{tpu_custom_call.1} parent=1 // pred_check_branch
      %147 = sbr.rel (0) target = $region29
    $region28: #{tpu_custom_call.1} parent=1 // pred_region
      %149 = dma.done [#allocation4], 256
    $region29: #{tpu_custom_call.1} parent=1 // pred_fallthru
      _
    // Predicated region
    $region30: #{tpu_custom_call.1} parent=1 // pred_check
      _
    $region31: #{tpu_custom_call.1} parent=1 // pred_check_branch
      %151 = sbr.rel (0) target = $region33
    $region32: #{tpu_custom_call.1} parent=1 // pred_region
      _
    $region33: #{tpu_custom_call.1} parent=1 // pred_fallthru
      _
    %152 = vsyncpa [#allocation3], 1
    %153 = vsyncpa [#allocation4], 1

</llo_original>
